<compile_context>
chip_gen: v5e
topology: v5e:2x2
jax: 0.10.0
libtpu: 0.0.40
codegen_flags: <defaults>
</compile_context>

<pallas_src>
import functools

import jax
import jax.numpy as jnp
from jax import lax
from jax.experimental import pallas as pl
from jax.experimental.pallas import tpu as pltpu


def _patch_merger_kernel(x_ref, qt_ref, g_ref, b_ref, o_ref, *, scale, eps,
                         matmul_dtype):
    # x_ref  : (Bt, N, D)  input slab for Bt batch elements
    # qt_ref : (D, M)      learned queries, pre-transposed in the wrapper
    # g_ref  : (1, D)      LayerNorm weight (gamma)
    # b_ref  : (1, D)      LayerNorm bias   (beta)
    # o_ref  : (Bt, M, D)  output block
    x = x_ref[...].astype(jnp.float32)                     # (Bt, N, D)

    # --- LayerNorm over last dim: two-pass (numerically safe) ---
    mean = jnp.mean(x, axis=-1, keepdims=True)             # (Bt, N, 1)
    cen = x - mean
    var = jnp.mean(cen * cen, axis=-1, keepdims=True)      # (Bt, N, 1)
    xn = cen * lax.rsqrt(var + eps)
    xn = xn * g_ref[...] + b_ref[...]                      # (1, D) broadcasts

    # --- MXU operands: bf16 in, f32 accumulate (intentional precision trade) ---
    xn_m = xn.astype(matmul_dtype)                         # (Bt, N, D)
    qt_m = qt_ref[...].astype(matmul_dtype)                # (D, M)

    # --- similarity^T: contract over D (xn minor / qT major) -> MXU-native,
    #     no relayout of the large xn operand. ---
    sim_t = jnp.einsum("bnd,dm->bnm", xn_m, qt_m,
                       preferred_element_type=jnp.float32) * scale   # (Bt, N, M)

    # --- softmax over the token axis (N), exact normalization ---
    sim_t = sim_t - jnp.max(sim_t, axis=1, keepdims=True)
    p = jnp.exp(sim_t)                                     # (Bt, N, M)
    p = p * (1.0 / jnp.sum(p, axis=1, keepdims=True))      # exact reciprocal (tiny)

    # --- out = attn @ xn : contract over N; only the small (N, M) matrix gets
    #     relaid out, xn is consumed in natural (N, D) layout. ---
    out = jnp.einsum("bnm,bnd->bmd", p.astype(matmul_dtype), xn_m,
                     preferred_element_type=jnp.float32)   # (Bt, M, D)
    o_ref[...] = out.astype(o_ref.dtype)


def _tpu_vmem_and_cores():
    """Per-TensorCore VMEM capacity and TC count (with safe fallbacks)."""
    vmem = 128 * 2**20
    cores = 1
    try:
        info = pltpu.get_tpu_info()
        vmem = int(getattr(info, "vmem_capacity_bytes", vmem) or vmem)
        cores = 0
        for name in ("num_cores", "tensorcore_count", "cores_per_chip",
                     "num_tensorcores"):
            val = getattr(info, name, None)
            if val:
                cores = int(val)
                break
        if cores <= 0:
            # Heuristic: 64-MiB/TC parts are the 2-TC generation (v7x);
            # 128-MiB parts (v5e/v6e) have a single TC.
            cores = 2 if vmem <= 64 * 2**20 else 1
    except Exception:
        vmem, cores = 128 * 2**20, 1
    return vmem, cores


def _per_batch_bytes(N, D, M, x_itemsize, out_itemsize):
    """VMEM working set per batch element (pipeline IO double-buffers + temps)."""
    return (2 * N * D * x_itemsize        # double-buffered x slab (DMA dtype)
            + 2 * N * D * 4               # f32 x / xn intermediates
            + N * D * 2                   # bf16 xn copy
            + N * M * 4 + N * M * 2       # sim/p in f32 + bf16
            + M * D * 4                   # f32 matmul result
            + 2 * M * D * out_itemsize)   # double-buffered output


def _choose_batch_tile(B, N, D, M, x_itemsize, out_itemsize, budget_bytes, two_tc):
    """Largest batch tile fitting the budget; split across TCs only when it pays."""
    per_b = _per_batch_bytes(N, D, M, x_itemsize, out_itemsize)
    bt = max(1, min(B, budget_bytes // max(per_b, 1)))
    if two_tc and B >= 2:
        half = pl.cdiv(B, 2)
        # Feed the second TensorCore only when each step still moves a few MiB;
        # otherwise the split is pure fixed overhead.
        if min(bt, half) * N * D * x_itemsize >= (2 << 20):
            bt = min(bt, half)
    return int(bt)


def patch_merger(x, queries, gamma, beta, *, eps=1e-5, matmul_dtype=jnp.bfloat16):
    """x: (B, N, D) f32 or bf16; queries: (M, D); gamma/beta: (D,). Returns (B, M, D)."""
    B, N, D = x.shape
    M, D2 = queries.shape
    assert D == D2
    scale = float(D) ** -0.5

    vmem_cap, n_cores = _tpu_vmem_and_cores()
    chooser_budget = int(0.40 * vmem_cap)          # ~51 MiB on 128-MiB parts, ~25 MiB on v7x
    x_bytes = x.dtype.itemsize
    out_bytes = x.dtype.itemsize

    Bt = _choose_batch_tile(B, N, D, M, x_bytes, out_bytes, chooser_budget,
                            two_tc=(n_cores >= 2))
    grid = (pl.cdiv(B, Bt),)                       # padded tail batch rows are discarded

    queries_t = jnp.transpose(queries)             # (D, M) — keeps xn untransposed in-kernel
    gamma2 = gamma.reshape(1, D)
    beta2 = beta.reshape(1, D)

    # Scoped VMEM sized to the working set, capped at ~80% of this generation's VMEM.
    est = (Bt * _per_batch_bytes(N, D, M, x_bytes, out_bytes)
           + (D * M + 2 * D) * 4 + (8 << 20))
    vmem_limit = int(min(0.80 * vmem_cap, max(32 * 2**20, est)))

    kernel = functools.partial(_patch_merger_kernel, scale=scale, eps=eps,
                               matmul_dtype=matmul_dtype)

    return pl.pallas_call(
        kernel,
        out_shape=jax.ShapeDtypeStruct((B, M, D), x.dtype),
        grid_spec=pltpu.PrefetchScalarGridSpec(
            num_scalar_prefetch=0,
            grid=grid,
            in_specs=[
                pl.BlockSpec((Bt, N, D), lambda b: (b, 0, 0)),   # x slab (Bt batches)
                pl.BlockSpec((D, M), lambda b: (0, 0)),          # queries^T
                pl.BlockSpec((1, D), lambda b: (0, 0)),          # gamma
                pl.BlockSpec((1, D), lambda b: (0, 0)),          # beta
            ],
            out_specs=pl.BlockSpec((Bt, M, D), lambda b: (b, 0, 0)),
        ),
        compiler_params=pltpu.CompilerParams(
            dimension_semantics=("parallel",),
            vmem_limit_bytes=vmem_limit,
        ),
    )(x, queries_t, gamma2, beta2)


def _reference(x, queries, gamma, beta, eps=1e-5):
    mean = jnp.mean(x, axis=-1, keepdims=True)
    var = jnp.mean((x - mean) ** 2, axis=-1, keepdims=True)
    xn = (x - mean) / jnp.sqrt(var + eps) * gamma + beta
    scale = x.shape[-1] ** -0.5
    sim = jnp.einsum("md,bnd->bmn", queries, xn) * scale
    attn = jax.nn.softmax(sim, axis=-1)
    return jnp.einsum("bmn,bnd->bmd", attn, xn)


if __name__ == "__main__":
    # Small shapes consistent with the module: batch=2, tokens=16, dim=32,
    # num_tokens_out=8.
    B, N, D, M = 2, 16, 32, 8

    key = jax.random.PRNGKey(0)
    kx, kq = jax.random.split(key)
    x = jax.random.normal(kx, (B, N, D), dtype=jnp.float32)

    # nn.LayerNorm default affine: ones / zeros; queries ~ N(0,1) like torch.randn.
    queries = jax.random.normal(kq, (M, D), dtype=jnp.float32)
    gamma = jnp.ones((D,), dtype=jnp.float32)
    beta = jnp.zeros((D,), dtype=jnp.float32)

    out = jax.block_until_ready(patch_merger(x, queries, gamma, beta))

    ref = _reference(x, queries, gamma, beta)
    assert out.shape == (B, M, D)
    # bf16 MXU operands (intentional) -> slightly looser tolerance vs f32 reference.
    assert jnp.allclose(out, ref, atol=2e-2, rtol=2e-2), "mismatch vs reference"

    print("KERNEL_OK")
</pallas_src>

<mosaic_0001>
module attributes {stable_mosaic.version = 11 : i64} {
  func.func @_patch_merger_kernel(%arg0: i32, %arg1: memref<2x16x32xf32, #tpu.memory_space<vmem>>, %arg2: memref<32x8xf32, #tpu.memory_space<vmem>>, %arg3: memref<1x32xf32, #tpu.memory_space<vmem>>, %arg4: memref<1x32xf32, #tpu.memory_space<vmem>>, %arg5: memref<2x8x32xf32, #tpu.memory_space<vmem>>) attributes {dimension_semantics = [#tpu.dimension_semantics<parallel>], iteration_bounds = array<i64: 1>, scalar_prefetch = 0 : i64, scratch_operands = 0 : i64, tpu.core_type = #tpu.core_type<tc>, window_params = [{transform_indices = @transform_0, window_bounds = array<i64: 2, 16, 32>}, {pipeline_mode = #tpu.pipeline_mode<synchronous>, transform_indices = @transform_1, window_bounds = array<i64: 32, 8>}, {pipeline_mode = #tpu.pipeline_mode<synchronous>, transform_indices = @transform_2, window_bounds = array<i64: 1, 32>}, {pipeline_mode = #tpu.pipeline_mode<synchronous>, transform_indices = @transform_3, window_bounds = array<i64: 1, 32>}, {transform_indices = @transform_4, window_bounds = array<i64: 2, 8, 32>}]} {
    %c0 = arith.constant 0 : index
    %c0_0 = arith.constant 0 : index
    %c0_1 = arith.constant 0 : index
    %0 = vector.load %arg1[%c0, %c0_0, %c0_1] : memref<2x16x32xf32, #tpu.memory_space<vmem>>, vector<2x16x32xf32>
    %cst = arith.constant dense<0.000000e+00> : vector<2x16xf32>
    %1 = vector.multi_reduction <add>, %0, %cst [2] : vector<2x16x32xf32> to vector<2x16xf32>
    %2 = vector.shape_cast %1 : vector<2x16xf32> to vector<2x16x1xf32>
    %cst_2 = arith.constant 3.200000e+01 : f32
    %3 = vector.broadcast %cst_2 : f32 to vector<2x16x1xf32>
    %4 = arith.divf %2, %3 : vector<2x16x1xf32>
    %5 = vector.broadcast %4 : vector<2x16x1xf32> to vector<2x16x32xf32>
    %6 = arith.subf %0, %5 : vector<2x16x32xf32>
    %7 = arith.mulf %6, %6 : vector<2x16x32xf32>
    %cst_3 = arith.constant dense<0.000000e+00> : vector<2x16xf32>
    %8 = vector.multi_reduction <add>, %7, %cst_3 [2] : vector<2x16x32xf32> to vector<2x16xf32>
    %9 = vector.shape_cast %8 : vector<2x16xf32> to vector<2x16x1xf32>
    %cst_4 = arith.constant 3.200000e+01 : f32
    %10 = vector.broadcast %cst_4 : f32 to vector<2x16x1xf32>
    %11 = arith.divf %9, %10 : vector<2x16x1xf32>
    %cst_5 = arith.constant 9.99999974E-6 : f32
    %12 = vector.broadcast %cst_5 : f32 to vector<2x16x1xf32>
    %13 = arith.addf %11, %12 : vector<2x16x1xf32>
    %14 = math.rsqrt %13 : vector<2x16x1xf32>
    %15 = vector.broadcast %14 : vector<2x16x1xf32> to vector<2x16x32xf32>
    %16 = arith.mulf %6, %15 : vector<2x16x32xf32>
    %c0_6 = arith.constant 0 : index
    %c0_7 = arith.constant 0 : index
    %17 = vector.load %arg3[%c0_6, %c0_7] : memref<1x32xf32, #tpu.memory_space<vmem>>, vector<1x32xf32>
    %18 = vector.shape_cast %17 : vector<1x32xf32> to vector<1x1x32xf32>
    %19 = vector.broadcast %18 : vector<1x1x32xf32> to vector<2x16x32xf32>
    %20 = arith.mulf %16, %19 : vector<2x16x32xf32>
    %c0_8 = arith.constant 0 : index
    %c0_9 = arith.constant 0 : index
    %21 = vector.load %arg4[%c0_8, %c0_9] : memref<1x32xf32, #tpu.memory_space<vmem>>, vector<1x32xf32>
    %22 = vector.shape_cast %21 : vector<1x32xf32> to vector<1x1x32xf32>
    %23 = vector.broadcast %22 : vector<1x1x32xf32> to vector<2x16x32xf32>
    %24 = arith.addf %20, %23 : vector<2x16x32xf32>
    %25 = arith.truncf %24 : vector<2x16x32xf32> to vector<2x16x32xbf16>
    %c0_10 = arith.constant 0 : index
    %c0_11 = arith.constant 0 : index
    %26 = vector.load %arg2[%c0_10, %c0_11] : memref<32x8xf32, #tpu.memory_space<vmem>>, vector<32x8xf32>
    %27 = arith.truncf %26 : vector<32x8xf32> to vector<32x8xbf16>
    "tpu.trace_start"() <{level = 10 : i32, message = "bnd,dm->bnm"}> : () -> ()
    %cst_12 = arith.constant dense<0.000000e+00> : vector<2x16x8xf32>
    %28 = tpu.matmul %25, %27, %cst_12 {dimension_numbers = #tpu.dot_dimension_numbers<[2], [0], [0, 1], [1], [0, 0, 0, 1, 1, 1], [], []>} : vector<2x16x32xbf16>, vector<32x8xbf16>, vector<2x16x8xf32> -> vector<2x16x8xf32>
    "tpu.trace_stop"() : () -> ()
    %cst_13 = arith.constant 0.176776692 : f32
    %29 = vector.broadcast %cst_13 : f32 to vector<2x16x8xf32>
    %30 = arith.mulf %28, %29 : vector<2x16x8xf32>
    %cst_14 = arith.constant dense<0xFF800000> : vector<2x8xf32>
    %31 = vector.multi_reduction <maximumf>, %30, %cst_14 [1] : vector<2x16x8xf32> to vector<2x8xf32>
    %32 = vector.shape_cast %31 : vector<2x8xf32> to vector<2x1x8xf32>
    %33 = vector.broadcast %32 : vector<2x1x8xf32> to vector<2x16x8xf32>
    %34 = arith.subf %30, %33 : vector<2x16x8xf32>
    %35 = math.exp %34 : vector<2x16x8xf32>
    %cst_15 = arith.constant dense<0.000000e+00> : vector<2x8xf32>
    %36 = vector.multi_reduction <add>, %35, %cst_15 [1] : vector<2x16x8xf32> to vector<2x8xf32>
    %37 = vector.shape_cast %36 : vector<2x8xf32> to vector<2x1x8xf32>
    %cst_16 = arith.constant 1.000000e+00 : f32
    %38 = vector.broadcast %cst_16 : f32 to vector<2x1x8xf32>
    %39 = arith.divf %38, %37 : vector<2x1x8xf32>
    %40 = vector.broadcast %39 : vector<2x1x8xf32> to vector<2x16x8xf32>
    %41 = arith.mulf %35, %40 : vector<2x16x8xf32>
    %42 = arith.truncf %41 : vector<2x16x8xf32> to vector<2x16x8xbf16>
    "tpu.trace_start"() <{level = 10 : i32, message = "bnm,bnd->bmd"}> : () -> ()
    %cst_17 = arith.constant dense<0.000000e+00> : vector<2x8x32xf32>
    %43 = tpu.matmul %42, %25, %cst_17 {dimension_numbers = #tpu.dot_dimension_numbers<[1], [1], [2], [2], [0, 0, 0, 2, 1, 2], [0], [0]>} : vector<2x16x8xbf16>, vector<2x16x32xbf16>, vector<2x8x32xf32> -> vector<2x8x32xf32>
    "tpu.trace_stop"() : () -> ()
    %c0_18 = arith.constant 0 : index
    %c0_19 = arith.constant 0 : index
    %c0_20 = arith.constant 0 : index
    %44 = vector.load %arg5[%c0_18, %c0_19, %c0_20] : memref<2x8x32xf32, #tpu.memory_space<vmem>>, vector<2x8x32xf32>
    tpu.vector_store %arg5[%c0_18, %c0_19, %c0_20], %43 {strides = array<i32>} : memref<2x8x32xf32, #tpu.memory_space<vmem>>, vector<2x8x32xf32>,
    return
  }
  func.func @transform_0(%arg0: i32) -> (i32, i32, i32) {
    %c0_i32 = arith.constant 0 : i32
    %c0_i32_0 = arith.constant 0 : i32
    %c0_i32_1 = arith.constant 0 : i32
    return %arg0, %c0_i32, %c0_i32_0 : i32, i32, i32
  }
  func.func @transform_1(%arg0: i32) -> (i32, i32) {
    %c0_i32 = arith.constant 0 : i32
    %c0_i32_0 = arith.constant 0 : i32
    %c0_i32_1 = arith.constant 0 : i32
    return %c0_i32, %c0_i32_0 : i32, i32
  }
  func.func @transform_2(%arg0: i32) -> (i32, i32) {
    %c0_i32 = arith.constant 0 : i32
    %c0_i32_0 = arith.constant 0 : i32
    %c0_i32_1 = arith.constant 0 : i32
    return %c0_i32, %c0_i32_0 : i32, i32
  }
  func.func @transform_3(%arg0: i32) -> (i32, i32) {
    %c0_i32 = arith.constant 0 : i32
    %c0_i32_0 = arith.constant 0 : i32
    %c0_i32_1 = arith.constant 0 : i32
    return %c0_i32, %c0_i32_0 : i32, i32
  }
  func.func @transform_4(%arg0: i32) -> (i32, i32, i32) {
    %c0_i32 = arith.constant 0 : i32
    %c0_i32_0 = arith.constant 0 : i32
    %c0_i32_1 = arith.constant 0 : i32
    return %arg0, %c0_i32, %c0_i32_0 : i32, i32, i32
  }
}

</mosaic_0001>

<llo_original>
// kernel: tpu_custom_call.1
$region0: #{tpu_custom_call.1}
  #allocation0 [shape = 'u32[]', space=smem, size = 0x4, offset = 0x4, fixed_abs, tag = 'smem constant byte address 0x4 - core index']
  #allocation1 [shape = 'u32[72,128]{1,0:T(1,128)}', space=vmem, size = 0x9000, scoped, tag = 'internal scratch']
  %s0 = inlined_call_operand.vmem [shape: f32[2,16,32], index: 0, kind: input, shape index: {}]
  %s1 = inlined_call_operand.vmem [shape: f32[32,8], index: 1, kind: input, shape index: {}]
  %s2 = inlined_call_operand.vmem [shape: f32[1,32], index: 2, kind: input, shape index: {}]
  %s3 = inlined_call_operand.vmem [shape: f32[1,32], index: 3, kind: input, shape index: {}]
  %s4 = inlined_call_operand.hbm [shape: f32[2,8,32], index: 4, kind: output, shape index: {}]
  %s5 = sld [smem:[#allocation0]]
  $region26: #{tpu_custom_call.1} parent=0
    _
  %s7 = ssub.s32 1, %s5
  %s8 = scalar_select 0, %s7, %s5
  $region1: #{tpu_custom_call.1} parent=0
    #allocation2 [shape = 'u8[8192]{0}', space=vmem, size = 0x2000, scoped, tag = 'output window, operand 0, single buffered']
    #allocation3 [shape = 's32[1]{0}', space=sflag, size = 0x4, scoped, tag = 'scoped memory for tpu_custom_call.1']
    %9 = vsyncpa [#allocation3], 0
    // Predicated region
    $region2: #{tpu_custom_call.1} parent=1 // pred_check
      _
    $region3: #{tpu_custom_call.1} parent=1 // pred_check_branch
      %11 = sbr.rel (0) target = $region5
    $region4: #{tpu_custom_call.1} parent=1 // pred_region
      _
    $region5: #{tpu_custom_call.1} parent=1 // pred_fallthru
      _
    // Predicated region
    $region6: #{tpu_custom_call.1} parent=1 // pred_check
      _
    $region7: #{tpu_custom_call.1} parent=1 // pred_check_branch
      %13 = sbr.rel (0) target = $region9
    $region8: #{tpu_custom_call.1} parent=1 // pred_region
      _
    $region9: #{tpu_custom_call.1} parent=1 // pred_fallthru
      _
    // Predicated region
    $region10: #{tpu_custom_call.1} parent=1 // pred_check
      _
    $region11: #{tpu_custom_call.1} parent=1 // pred_check_branch
      %15 = sbr.rel (0) target = $region13
    $region12: #{tpu_custom_call.1} parent=1 // pred_region
      _
    $region13: #{tpu_custom_call.1} parent=1 // pred_fallthru
      _
    // Predicated region
    $region14: #{tpu_custom_call.1} parent=1 // pred_check
      _
    $region15: #{tpu_custom_call.1} parent=1 // pred_check_branch
      %17 = sbr.rel (0) target = $region17
    $region16: #{tpu_custom_call.1} parent=1 // pred_region
      _
    $region17: #{tpu_custom_call.1} parent=1 // pred_fallthru
      _
    %v19 = vld [vmem:[%s0] sm:$0xff]
    %v20 = vld [vmem:[%s0 + $0x8] sm:$0xff]
    %v21 = vld [vmem:[%s0 + $0x10] sm:$0xff]
    %v22 = vld [vmem:[%s0 + $0x18] sm:$0xff]
    %vm23 = vcmask 261120
    %v24 = vsel %vm23, %v19, 0.0
    %25 = vadd.xlane.f32.xlu0 %v24
    %v26 = vpop.xlane.xlu0 %25
    %v27 = vsel %vm23, %v20, 0.0
    %28 = vadd.xlane.f32.xlu0 %v27
    %v29 = vpop.xlane.xlu0 %28
    %v30 = vsel %vm23, %v21, 0.0
    %31 = vadd.xlane.f32.xlu0 %v30
    %v32 = vpop.xlane.xlu0 %31
    %v33 = vsel %vm23, %v22, 0.0
    %34 = vadd.xlane.f32.xlu0 %v33
    %v35 = vpop.xlane.xlu0 %34
    %v36 = vrcp.pop 32.0
    %v37 = vmul.f32 32.0, %v36
    %v38 = vsub.f32 1.0, %v37
    %v39 = vmul.f32 %v36, %v38
    %v40 = vadd.f32 %v36, %v39
    %vm41 = vweird.f32 %v36
    %v42 = vsel %vm41, %v36, %v40
    %v43 = vmul.f32 %v26, %v42
    %v44 = vmul.f32 %v29, %v42
    %v45 = vmul.f32 %v32, %v42
    %v46 = vmul.f32 %v35, %v42
    %v47 = vsub.f32 %v19, %v43
    %v48 = vsub.f32 %v20, %v44
    %v49 = vsub.f32 %v21, %v45
    %v50 = vsub.f32 %v22, %v46
    %v51 = vmul.f32 %v47, %v47
    %v52 = vmul.f32 %v48, %v48
    %v53 = vmul.f32 %v49, %v49
    %v54 = vmul.f32 %v50, %v50
    %v55 = vsel %vm23, %v51, 0.0
    %56 = vadd.xlane.f32.xlu0 %v55
    %v57 = vpop.xlane.xlu0 %56
    %v58 = vsel %vm23, %v52, 0.0
    %59 = vadd.xlane.f32.xlu0 %v58
    %v60 = vpop.xlane.xlu0 %59
    %v61 = vsel %vm23, %v53, 0.0
    %62 = vadd.xlane.f32.xlu0 %v61
    %v63 = vpop.xlane.xlu0 %62
    %v64 = vsel %vm23, %v54, 0.0
    %65 = vadd.xlane.f32.xlu0 %v64
    %v66 = vpop.xlane.xlu0 %65
    %v67 = vmul.f32 %v57, %v42
    %v68 = vmul.f32 %v60, %v42
    %v69 = vmul.f32 %v63, %v42
    %v70 = vmul.f32 %v66, %v42
    %v71 = vadd.f32 %v67, 1e-05
    %v72 = vadd.f32 %v68, 1e-05
    %v73 = vadd.f32 %v69, 1e-05
    %v74 = vadd.f32 %v70, 1e-05
    %v75 = vrsqrt.pop %v71
    %v76 = vmul.f32 %v75, %v71
    %v77 = vmul.f32 %v76, %v75
    %v78 = vmul.f32 0.5, %v77
    %v79 = vsub.f32 1.5, %v78
    %v80 = vmul.f32 %v75, %v79
    %vm81 = vweird.f32 %v71
    %vm82 = vweird.f32 %v75
    %vm83 = vmor %vm81, %vm82
    %v84 = vsel %vm83, %v75, %v80
    %v85 = vrsqrt.pop %v72
    %v86 = vmul.f32 %v85, %v72
    %v87 = vmul.f32 %v86, %v85
    %v88 = vmul.f32 0.5, %v87
    %v89 = vsub.f32 1.5, %v88
    %v90 = vmul.f32 %v85, %v89
    %vm91 = vweird.f32 %v72
    %vm92 = vweird.f32 %v85
    %vm93 = vmor %vm91, %vm92
    %v94 = vsel %vm93, %v85, %v90
    %v95 = vrsqrt.pop %v73
    %v96 = vmul.f32 %v95, %v73
    %v97 = vmul.f32 %v96, %v95
    %v98 = vmul.f32 0.5, %v97
    %v99 = vsub.f32 1.5, %v98
    %v100 = vmul.f32 %v95, %v99
    %vm101 = vweird.f32 %v73
    %vm102 = vweird.f32 %v95
    %vm103 = vmor %vm101, %vm102
    %v104 = vsel %vm103, %v95, %v100
    %v105 = vrsqrt.pop %v74
    %v106 = vmul.f32 %v105, %v74
    %v107 = vmul.f32 %v106, %v105
    %v108 = vmul.f32 0.5, %v107
    %v109 = vsub.f32 1.5, %v108
    %v110 = vmul.f32 %v105, %v109
    %vm111 = vweird.f32 %v74
    %vm112 = vweird.f32 %v105
    %vm113 = vmor %vm111, %vm112
    %v114 = vsel %vm113, %v105, %v110
    %v115 = vmul.f32 %v47, %v84
    %v116 = vmul.f32 %v48, %v94
    %v117 = vmul.f32 %v49, %v104
    %v118 = vmul.f32 %v50, %v114
    %v119 = vld [vmem:[%s2] sm:$0x1]
    %v121 = vperm.slane %v119, 0
    %v123 = vmul.f32 %v115, %v121
    %v124 = vmul.f32 %v116, %v121
    %v125 = vmul.f32 %v117, %v121
    %v126 = vmul.f32 %v118, %v121
    %v127 = vld [vmem:[%s3] sm:$0x1]
    %v129 = vperm.slane %v127, 0
    %v131 = vadd.f32 %v123, %v129
    %v132 = vadd.f32 %v124, %v129
    %v133 = vadd.f32 %v125, %v129
    %v134 = vadd.f32 %v126, %v129
    %v135 = vpack.c.bf16 %v131, %v131
    %v136 = vpack.c.bf16 %v132, %v132
    %v137 = vpack.c.bf16 %v133, %v133
    %v138 = vpack.c.bf16 %v134, %v134
    %v139 = vld [vmem:[%s1] sm:$0xff]
    %v140 = vld [vmem:[%s1 + $0x8] sm:$0xff]
    %v141 = vld [vmem:[%s1 + $0x10] sm:$0xff]
    %v142 = vld [vmem:[%s1 + $0x18] sm:$0xff]
    %v143 = vpack.c.bf16 %v140, %v139
    %v144 = vpack.c.bf16 %v142, %v141
    %v149 = vunpack.c.l.b16 %v135
    %v150 = vunpack.c.l.b16 %v136
    %v151 = vunpack.c.l.b16 %v137
    %v152 = vunpack.c.l.b16 %v138
    %v153 = vpack.c.b16 %v150, %v149
    %v154 = vpack.c.b16 %v152, %v151
    %v156 = vsel %vm23, %v153, 0
    %v159 = vsel %vm23, %v154, 0
    %161 = vmatpush.bf16.msra.mxu0 0
    %162 = vmatpush.bf16.msra.mxu0 0
    %163 = vmatpush.bf16.msra.mxu0 0
    %164 = vmatpush.bf16.msra.mxu0 0
    %165 = vmatpush.bf16.msra.mxu0 0
    %166 = vmatpush.bf16.msra.mxu0 0
    %167 = vmatpush.bf16.msra.mxu0 %v144
    %168 = vmatpush.bf16.msra.mxu0 %v143
    %169 = vmatmul.bf16.gmra.mxu0 %v156
    %v170 = vpop.f32.mrf.mxu0
    %v171 = vadd.f32 0.0, %v170
    %v172 = vpop.f32.mrf.mxu0
    %v173 = vadd.f32 0.0, %v172
    %174 = vmatmul.bf16.gmra.mxu0 %v159
    %v175 = vpop.f32.mrf.mxu0
    %v176 = vadd.f32 0.0, %v175
    %v177 = vpop.f32.mrf.mxu0
    %v178 = vadd.f32 0.0, %v177
    %179 = vdwg.mxu0
    %v180 = vmul.f32 %v171, 0.17677669
    %v181 = vmul.f32 %v173, 0.17677669
    %v182 = vmul.f32 %v176, 0.17677669
    %v183 = vmul.f32 %v178, 0.17677669
    %vm184 = vcmask 64512
    %v185 = vsel %vm184, %v180, -inf
    %v186 = vsel %vm184, %v181, -inf
    %v187 = vmax.f32 %v185, %v186
    %v188 = vrot.slane %v187, 4
    %v189 = vmax.f32 %v187, %v188
    %v190 = vrot.slane %v189, 2
    %v191 = vmax.f32 %v189, %v190
    %v192 = vrot.slane %v191, 1
    %v193 = vmax.f32 %v191, %v192
    %v194 = vsel %vm184, %v182, -inf
    %v195 = vsel %vm184, %v183, -inf
    %v196 = vmax.f32 %v194, %v195
    %v197 = vrot.slane %v196, 4
    %v198 = vmax.f32 %v196, %v197
    %v199 = vrot.slane %v198, 2
    %v200 = vmax.f32 %v198, %v199
    %v201 = vrot.slane %v200, 1
    %v202 = vmax.f32 %v200, %v201
    %v203 = vsub.f32 %v180, %v193
    %v204 = vsub.f32 %v181, %v193
    %v205 = vsub.f32 %v182, %v202
    %v206 = vsub.f32 %v183, %v202
    %v207 = vmul.f32 %v203, 1.442695
    %v208 = vpow.pop %v207
    %v209 = vmul.f32 %v204, 1.442695
    %v210 = vpow.pop %v209
    %v211 = vmul.f32 %v205, 1.442695
    %v212 = vpow.pop %v211
    %v213 = vmul.f32 %v206, 1.442695
    %v214 = vpow.pop %v213
    %v215 = vsel %vm184, %v208, 0.0
    %v216 = vsel %vm184, %v210, 0.0
    %v217 = vadd.f32 %v215, %v216
    %v218 = vrot.slane %v217, 4
    %v219 = vadd.f32 %v217, %v218
    %v220 = vrot.slane %v219, 2
    %v221 = vadd.f32 %v219, %v220
    %v222 = vrot.slane %v221, 1
    %v223 = vadd.f32 %v221, %v222
    %v224 = vsel %vm184, %v212, 0.0
    %v225 = vsel %vm184, %v214, 0.0
    %v226 = vadd.f32 %v224, %v225
    %v227 = vrot.slane %v226, 4
    %v228 = vadd.f32 %v226, %v227
    %v229 = vrot.slane %v228, 2
    %v230 = vadd.f32 %v228, %v229
    %v231 = vrot.slane %v230, 1
    %v232 = vadd.f32 %v230, %v231
    %v233 = vrcp.pop %v223
    %v234 = vmul.f32 %v223, %v233
    %v235 = vsub.f32 1.0, %v234
    %v236 = vmul.f32 %v233, %v235
    %v237 = vadd.f32 %v233, %v236
    %vm238 = vweird.f32 %v223
    %vm239 = vweird.f32 %v233
    %vm240 = vmor %vm238, %vm239
    %v241 = vsel %vm240, %v233, %v237
    %v242 = vand.u32 2147483647, %v223
    %vm243 = vcmp.eq.f32.partialorder %v242, 8.507059e+37
    %v244 = vand.u32 %v223, 2147483648
    %v245 = vor.u32 1.1754944e-38, %v244
    %v246 = vsel %vm243, %v245, %v241
    %v247 = vmul.f32 1.0, %v246
    %v248 = vrcp.pop %v232
    %v249 = vmul.f32 %v232, %v248
    %v250 = vsub.f32 1.0, %v249
    %v251 = vmul.f32 %v248, %v250
    %v252 = vadd.f32 %v248, %v251
    %vm253 = vweird.f32 %v232
    %vm254 = vweird.f32 %v248
    %vm255 = vmor %vm253, %vm254
    %v256 = vsel %vm255, %v248, %v252
    %v257 = vand.u32 2147483647, %v232
    %vm258 = vcmp.eq.f32.partialorder %v257, 8.507059e+37
    %v259 = vand.u32 %v232, 2147483648
    %v260 = vor.u32 1.1754944e-38, %v259
    %v261 = vsel %vm258, %v260, %v256
    %v262 = vmul.f32 1.0, %v261
    %v263 = vmul.f32 %v208, %v247
    %v264 = vmul.f32 %v210, %v247
    %v265 = vmul.f32 %v212, %v262
    %v266 = vmul.f32 %v214, %v262
    %v267 = vpack.c.bf16 %v263, %v263
    %v268 = vpack.c.bf16 %v264, %v264
    %v269 = vpack.c.bf16 %v265, %v265
    %v270 = vpack.c.bf16 %v266, %v266
    %v273 = vunpack.c.l.b16 %v267
    %v274 = vunpack.c.l.b16 %v268
    %v275 = vpack.c.b16 %v274, %v273
    %277 = vxpose.xlu0.c.b16.start [1/8] %v275, 128
    %278 = vxpose.xlu0.c.b16.cont [2/8] 0, 128
    %279 = vxpose.xlu0.c.b16.cont [3/8] 0, 128
    %280 = vxpose.xlu0.c.b16.cont [4/8] 0, 128
    %281 = vxpose.xlu0.c.b16.cont [5/8] 0, 128
    %282 = vxpose.xlu0.c.b16.cont [6/8] 0, 128
    %283 = vxpose.xlu0.c.b16.cont [7/8] 0, 128
    %284 = vxpose.xlu0.c.b16.end [8/8] 0, 128
    %v285 = vpop.trf.xlu0
    %v286 = vpop.trf.xlu0
    %v287 = vpop.trf.xlu0
    %v288 = vpop.trf.xlu0
    %v289 = vpop.trf.xlu0
    %v290 = vpop.trf.xlu0
    %v291 = vpop.trf.xlu0
    %v292 = vpop.trf.xlu0
    %vm294 = vcmask 130048
    %v296 = vsel %vm294, %v285, 0
    %298 = vmatpush.bf16.msra.mxu0 0
    %299 = vmatpush.bf16.msra.mxu0 0
    %300 = vmatpush.bf16.msra.mxu0 0
    %301 = vmatpush.bf16.msra.mxu0 0
    %302 = vmatpush.bf16.msra.mxu0 0
    %303 = vmatpush.bf16.msra.mxu0 0
    %304 = vmatpush.bf16.msra.mxu0 0
    %305 = vmatpush.bf16.msra.mxu0 %v153
    %306 = vmatmul.bf16.gmra.mxu0 %v296
    %v307 = vpop.f32.mrf.mxu0
    %v308 = vadd.f32 0.0, %v307
    %v309 = vpop.f32.mrf.mxu0
    %310 = vdwg.mxu0
    %v313 = vunpack.c.l.b16 %v269
    %v314 = vunpack.c.l.b16 %v270
    %v315 = vpack.c.b16 %v314, %v313
    %317 = vxpose.xlu0.c.b16.start [1/8] %v315, 128
    %318 = vxpose.xlu0.c.b16.cont [2/8] 0, 128
    %319 = vxpose.xlu0.c.b16.cont [3/8] 0, 128
    %320 = vxpose.xlu0.c.b16.cont [4/8] 0, 128
    %321 = vxpose.xlu0.c.b16.cont [5/8] 0, 128
    %322 = vxpose.xlu0.c.b16.cont [6/8] 0, 128
    %323 = vxpose.xlu0.c.b16.cont [7/8] 0, 128
    %324 = vxpose.xlu0.c.b16.end [8/8] 0, 128
    %v325 = vpop.trf.xlu0
    %v326 = vpop.trf.xlu0
    %v327 = vpop.trf.xlu0
    %v328 = vpop.trf.xlu0
    %v329 = vpop.trf.xlu0
    %v330 = vpop.trf.xlu0
    %v331 = vpop.trf.xlu0
    %v332 = vpop.trf.xlu0
    %v335 = vsel %vm294, %v325, 0
    %337 = vmatpush.bf16.msra.mxu0 0
    %338 = vmatpush.bf16.msra.mxu0 0
    %339 = vmatpush.bf16.msra.mxu0 0
    %340 = vmatpush.bf16.msra.mxu0 0
    %341 = vmatpush.bf16.msra.mxu0 0
    %342 = vmatpush.bf16.msra.mxu0 0
    %343 = vmatpush.bf16.msra.mxu0 0
    %344 = vmatpush.bf16.msra.mxu0 %v154
    %345 = vmatmul.bf16.gmra.mxu0 %v335
    %v346 = vpop.f32.mrf.mxu0
    %v347 = vadd.f32 0.0, %v346
    %v348 = vpop.f32.mrf.mxu0
    %349 = vdwg.mxu0
    %350 = vst.msk [vmem:[#allocation2] sm:$0xff] %vm23, %v308
    %351 = vst.msk [vmem:[#allocation2 + $0x8] sm:$0xff] %vm23, %v347
    // Predicated region
    $region18: #{tpu_custom_call.1} parent=1 // pred_check
      _
    $region19: #{tpu_custom_call.1} parent=1 // pred_check_branch
      %353 = sbr.rel (0) target = $region21
    $region20: #{tpu_custom_call.1} parent=1 // pred_region
      %355 = vsyncadd [#allocation3], 0
      %s356 = sshll.u32 [#allocation2], 4
      %s357 = int_to_ptr.vmem [resolvable:$true] %s356
      %s358 = sshll.u32 %s4, 4
      %s359 = int_to_ptr.hbm [resolvable:$true] %s358
      %364 = dma.vmem_to_hbm [thread:$0]  %s357, 256, %s359, [#allocation3], 128, 128, 8
    $region21: #{tpu_custom_call.1} parent=1 // pred_fallthru
      _
    // Predicated region
    $region22: #{tpu_custom_call.1} parent=1 // pred_check
      _
    $region23: #{tpu_custom_call.1} parent=1 // pred_check_branch
      %366 = sbr.rel (0) target = $region25
    $region24: #{tpu_custom_call.1} parent=1 // pred_region
      %368 = dma.done [#allocation3], 256
    $region25: #{tpu_custom_call.1} parent=1 // pred_fallthru
      _
    %369 = vsyncpa [#allocation3], 1

</llo_original>
